<compile_context>
chip_gen: v6e
topology: v6e:2x2x1
jax: 0.10.0
libtpu: 0.0.40
codegen_flags: <defaults>
</compile_context>

<pallas_src>
import functools

import jax
import jax.numpy as jnp
from jax.experimental import pallas as pl
from jax.experimental.pallas import tpu as pltpu


# ---------------------------------------------------------------------------
# Fused kernel: whole batch in one invocation (no grid)
# ---------------------------------------------------------------------------
def fused_attention_kernel(x_ref, wqkv_ref, wo_ref, bo_ref, o_ref, *,
                           batch, seq, heads, dim_head, scale):
    dim = wo_ref.shape[1]
    qk_dim = heads * dim_head

    # Fused q/k/v projection over the whole (b*n, dim) slab.
    # bf16 MXU operands, f32 accumulation.
    x = x_ref[...].astype(jnp.bfloat16)                       # (b*n, dim)
    qkv = jnp.dot(x, wqkv_ref[...],                           # wqkv is bf16
                  preferred_element_type=jnp.float32)         # (b*n, 3*qk_dim)

    qkv = qkv.reshape(batch, seq, 3 * qk_dim)
    # Scale q (touches b*n*qk_dim elements instead of heads*b*n*n scores).
    q = qkv[:, :, 0 * qk_dim:1 * qk_dim] * scale
    k = qkv[:, :, 1 * qk_dim:2 * qk_dim]
    v = qkv[:, :, 2 * qk_dim:3 * qk_dim]

    head_outs = []
    for h in range(heads):                     # static unroll (heads is small)
        sl = slice(h * dim_head, (h + 1) * dim_head)
        qh = q[:, :, sl].astype(jnp.bfloat16)
        kh = k[:, :, sl].astype(jnp.bfloat16)
        vh = v[:, :, sl].astype(jnp.bfloat16)

        # s[b, i, j] = q_i . k_j  (batched over b, contract last axes -> no k^T)
        s = jnp.einsum('bqd,bkd->bqk', qh, kh,
                       preferred_element_type=jnp.float32)    # (b, n, n) f32

        # Numerically stable softmax over the key axis, kept in f32
        # (v5e VPU/EUP have no bf16 path; exact reciprocal for parity —
        # switch to approx=True at scale to push the divide to the EUP slot).
        m = jnp.max(s, axis=-1, keepdims=True)
        p = jnp.exp(s - m)
        p = p * pl.reciprocal(jnp.sum(p, axis=-1, keepdims=True))

        head_outs.append(
            jnp.einsum('bqk,bkd->bqd', p.astype(jnp.bfloat16), vh,
                       preferred_element_type=jnp.float32))   # (b, n, d_h)

    # Merged head outputs -> single output-projection matmul with K=qk_dim
    # (fills the MXU contraction depth instead of heads small-K dots).
    out_slab = jnp.concatenate(head_outs, axis=-1)            # (b, n, qk_dim)
    out_slab = out_slab.reshape(batch * seq, qk_dim).astype(jnp.bfloat16)
    out = jnp.dot(out_slab, wo_ref[...],
                  preferred_element_type=jnp.float32)         # (b*n, dim)

    # Output projection bias (broadcast (1, dim) -> (b*n, dim)); lane-dense store.
    o_ref[...] = out + bo_ref[...]


# ---------------------------------------------------------------------------
# Wrapper
# ---------------------------------------------------------------------------
def attention_forward(x, params, *, heads, dim_head):
    b, n, dim = x.shape
    qk_dim = heads * dim_head
    scale = dim_head ** (-0.5)

    # One-time fusion of the three projection weights; weights live in HBM as
    # bf16 (in production pre-fuse / pre-cast in the checkpoint).
    wqkv = jnp.concatenate(
        [params["wq"], params["wk"], params["wv"]], axis=1).astype(jnp.bfloat16)
    wo = params["wo"].astype(jnp.bfloat16)
    bo = params["bo"].astype(jnp.float32)

    # Layout-level no-op reshape: gives the fused projection M = b*n rows.
    x2 = x.reshape(b * n, dim)

    kernel = functools.partial(
        fused_attention_kernel,
        batch=b, seq=n, heads=heads, dim_head=dim_head, scale=scale)

    flops = 2 * b * n * dim * 3 * qk_dim          # fused qkv projection
    flops += 2 * b * heads * n * n * dim_head * 2  # QK^T + PV
    flops += 2 * b * n * qk_dim * dim              # output projection
    transcendentals = b * heads * n * n            # exp in softmax
    bytes_accessed = (x2.size * 4 + wqkv.size * 2 + wo.size * 2
                      + bo.size * 4 + b * n * dim * 4)

    out = pl.pallas_call(
        kernel,
        # Single invocation (no grid): at toy shapes the ~0.35 us per-grid-step
        # overhead would dominate, everything fits comfortably in VMEM, and
        # the constant weights are DMA'd exactly once (no double buffering).
        in_specs=[
            pl.BlockSpec(memory_space=pltpu.MemorySpace.VMEM),  # x  (b*n, dim)
            pl.BlockSpec(memory_space=pltpu.MemorySpace.VMEM),  # wqkv bf16
            pl.BlockSpec(memory_space=pltpu.MemorySpace.VMEM),  # wo   bf16
            pl.BlockSpec(memory_space=pltpu.MemorySpace.VMEM),  # bo
        ],
        out_specs=pl.BlockSpec(memory_space=pltpu.MemorySpace.VMEM),
        out_shape=jax.ShapeDtypeStruct((b * n, dim), jnp.float32),
        cost_estimate=pl.CostEstimate(
            flops=int(flops),
            transcendentals=int(transcendentals),
            bytes_accessed=int(bytes_accessed)),
    )(x2, wqkv, wo, bo)

    return out.reshape(b, n, dim)


# ---------------------------------------------------------------------------
# Reference (plain JAX, f32) for a sanity check
# ---------------------------------------------------------------------------
def attention_reference(x, params, *, heads, dim_head):
    b, n, dim = x.shape
    scale = dim_head ** (-0.5)
    q = x @ params["wq"]
    k = x @ params["wk"]
    v = x @ params["wv"]
    sh = lambda t: t.reshape(b, n, heads, dim_head).transpose(0, 2, 1, 3)
    q, k, v = sh(q), sh(k), sh(v)
    dots = jnp.einsum("bhid,bhjd->bhij", q, k) * scale
    attn = jax.nn.softmax(dots, axis=-1)
    o = jnp.einsum("bhij,bhjd->bhid", attn, v)
    o = o.transpose(0, 2, 1, 3).reshape(b, n, heads * dim_head)
    return o @ params["wo"] + params["bo"]


# ---------------------------------------------------------------------------
# Parameter init (deterministic, PyTorch-Linear-like uniform init)
# ---------------------------------------------------------------------------
def init_params(key, dim, heads, dim_head):
    qk_dim = v_dim = heads * dim_head
    k1, k2, k3, k4, k5 = jax.random.split(key, 5)

    def lin(k, fan_in, fan_out):
        bound = 1.0 / jnp.sqrt(fan_in)
        return jax.random.uniform(
            k, (fan_in, fan_out), jnp.float32, minval=-bound, maxval=bound)

    return {
        "wq": lin(k1, dim, qk_dim),
        "wk": lin(k2, dim, qk_dim),
        "wv": lin(k3, dim, v_dim),
        "wo": lin(k4, v_dim, dim),
        "bo": jax.random.uniform(
            k5, (1, dim), jnp.float32,
            minval=-1.0 / jnp.sqrt(v_dim), maxval=1.0 / jnp.sqrt(v_dim)),
    }


if __name__ == "__main__":
    # small shapes consistent with the module: dim=32, heads=2, dim_head=16
    batch, seq, dim = 2, 8, 32
    heads, dim_head = 2, 16

    key = jax.random.PRNGKey(0)
    kx, kp = jax.random.split(key)
    x = jax.random.normal(kx, (batch, seq, dim), dtype=jnp.float32)
    params = init_params(kp, dim, heads, dim_head)

    out = attention_forward(x, params, heads=heads, dim_head=dim_head)
    out = jax.block_until_ready(out)

    ref = attention_reference(x, params, heads=heads, dim_head=dim_head)
    assert out.shape == (batch, seq, dim)
    # Tolerance accounts for bf16 MXU operands (weights + activations) with
    # f32 accumulation; the softmax itself is f32 with an exact reciprocal.
    assert jnp.allclose(out, ref, atol=3e-2, rtol=3e-2), (
        float(jnp.max(jnp.abs(out - ref))))

    print("KERNEL_OK")
</pallas_src>

<mosaic_0001>
module attributes {stable_mosaic.version = 11 : i64} {
  func.func @fused_attention_kernel(%arg0: memref<16x32xf32, #tpu.memory_space<vmem>>, %arg1: memref<32x96xbf16, #tpu.memory_space<vmem>>, %arg2: memref<32x32xbf16, #tpu.memory_space<vmem>>, %arg3: memref<1x32xf32, #tpu.memory_space<vmem>>, %arg4: memref<16x32xf32, #tpu.memory_space<vmem>>) attributes {dimension_semantics = [], scalar_prefetch = 0 : i64, scratch_operands = 0 : i64, tpu.core_type = #tpu.core_type<tc>} {
    %c0 = arith.constant 0 : index
    %c0_0 = arith.constant 0 : index
    %0 = vector.load %arg0[%c0, %c0_0] : memref<16x32xf32, #tpu.memory_space<vmem>>, vector<16x32xf32>
    %1 = arith.truncf %0 : vector<16x32xf32> to vector<16x32xbf16>
    %c0_1 = arith.constant 0 : index
    %c0_2 = arith.constant 0 : index
    %2 = vector.load %arg1[%c0_1, %c0_2] : memref<32x96xbf16, #tpu.memory_space<vmem>>, vector<32x96xbf16>
    %cst = arith.constant dense<0.000000e+00> : vector<16x96xf32>
    %3 = tpu.matmul %1, %2, %cst {dimension_numbers = #tpu.dot_dimension_numbers<[1], [0], [0], [1], [0, 0, 1, 1], [], []>} : vector<16x32xbf16>, vector<32x96xbf16>, vector<16x96xf32> -> vector<16x96xf32>
    %4 = vector.shape_cast %3 : vector<16x96xf32> to vector<2x8x96xf32>
    %5 = vector.extract_strided_slice %4 {offsets = [0, 0, 0], sizes = [2, 8, 32], strides = [1, 1, 1]} : vector<2x8x96xf32> to vector<2x8x32xf32>
    %cst_3 = arith.constant 2.500000e-01 : f32
    %6 = vector.broadcast %cst_3 : f32 to vector<2x8x32xf32>
    %7 = arith.mulf %5, %6 : vector<2x8x32xf32>
    %8 = vector.extract_strided_slice %4 {offsets = [0, 0, 32], sizes = [2, 8, 32], strides = [1, 1, 1]} : vector<2x8x96xf32> to vector<2x8x32xf32>
    %9 = vector.extract_strided_slice %4 {offsets = [0, 0, 64], sizes = [2, 8, 32], strides = [1, 1, 1]} : vector<2x8x96xf32> to vector<2x8x32xf32>
    %10 = vector.extract_strided_slice %7 {offsets = [0, 0, 0], sizes = [2, 8, 16], strides = [1, 1, 1]} : vector<2x8x32xf32> to vector<2x8x16xf32>
    %11 = arith.truncf %10 : vector<2x8x16xf32> to vector<2x8x16xbf16>
    %12 = vector.extract_strided_slice %8 {offsets = [0, 0, 0], sizes = [2, 8, 16], strides = [1, 1, 1]} : vector<2x8x32xf32> to vector<2x8x16xf32>
    %13 = arith.truncf %12 : vector<2x8x16xf32> to vector<2x8x16xbf16>
    %14 = vector.extract_strided_slice %9 {offsets = [0, 0, 0], sizes = [2, 8, 16], strides = [1, 1, 1]} : vector<2x8x32xf32> to vector<2x8x16xf32>
    %15 = arith.truncf %14 : vector<2x8x16xf32> to vector<2x8x16xbf16>
    "tpu.trace_start"() <{level = 10 : i32, message = "bqd,bkd->bqk"}> : () -> ()
    %cst_4 = arith.constant dense<0.000000e+00> : vector<2x8x8xf32>
    %16 = tpu.matmul %11, %13, %cst_4 {dimension_numbers = #tpu.dot_dimension_numbers<[2], [2], [1], [1], [0, 0, 0, 1, 1, 1], [0], [0]>} : vector<2x8x16xbf16>, vector<2x8x16xbf16>, vector<2x8x8xf32> -> vector<2x8x8xf32>
    "tpu.trace_stop"() : () -> ()
    %cst_5 = arith.constant dense<0xFF800000> : vector<2x8xf32>
    %17 = vector.multi_reduction <maximumf>, %16, %cst_5 [2] : vector<2x8x8xf32> to vector<2x8xf32>
    %18 = vector.shape_cast %17 : vector<2x8xf32> to vector<2x8x1xf32>
    %19 = vector.broadcast %18 : vector<2x8x1xf32> to vector<2x8x8xf32>
    %20 = arith.subf %16, %19 : vector<2x8x8xf32>
    %21 = math.exp %20 : vector<2x8x8xf32>
    %cst_6 = arith.constant dense<0.000000e+00> : vector<2x8xf32>
    %22 = vector.multi_reduction <add>, %21, %cst_6 [2] : vector<2x8x8xf32> to vector<2x8xf32>
    %23 = vector.shape_cast %22 : vector<2x8xf32> to vector<2x8x1xf32>
    %24 = tpu.reciprocal %23 : vector<2x8x1xf32> -> vector<2x8x1xf32>
    %25 = vector.broadcast %24 : vector<2x8x1xf32> to vector<2x8x8xf32>
    %26 = arith.mulf %21, %25 : vector<2x8x8xf32>
    %27 = arith.truncf %26 : vector<2x8x8xf32> to vector<2x8x8xbf16>
    "tpu.trace_start"() <{level = 10 : i32, message = "bqk,bkd->bqd"}> : () -> ()
    %cst_7 = arith.constant dense<0.000000e+00> : vector<2x8x16xf32>
    %28 = tpu.matmul %27, %15, %cst_7 {dimension_numbers = #tpu.dot_dimension_numbers<[2], [1], [1], [2], [0, 0, 0, 1, 1, 2], [0], [0]>} : vector<2x8x8xbf16>, vector<2x8x16xbf16>, vector<2x8x16xf32> -> vector<2x8x16xf32>
    "tpu.trace_stop"() : () -> ()
    %29 = vector.extract_strided_slice %7 {offsets = [0, 0, 16], sizes = [2, 8, 16], strides = [1, 1, 1]} : vector<2x8x32xf32> to vector<2x8x16xf32>
    %30 = arith.truncf %29 : vector<2x8x16xf32> to vector<2x8x16xbf16>
    %31 = vector.extract_strided_slice %8 {offsets = [0, 0, 16], sizes = [2, 8, 16], strides = [1, 1, 1]} : vector<2x8x32xf32> to vector<2x8x16xf32>
    %32 = arith.truncf %31 : vector<2x8x16xf32> to vector<2x8x16xbf16>
    %33 = vector.extract_strided_slice %9 {offsets = [0, 0, 16], sizes = [2, 8, 16], strides = [1, 1, 1]} : vector<2x8x32xf32> to vector<2x8x16xf32>
    %34 = arith.truncf %33 : vector<2x8x16xf32> to vector<2x8x16xbf16>
    "tpu.trace_start"() <{level = 10 : i32, message = "bqd,bkd->bqk"}> : () -> ()
    %cst_8 = arith.constant dense<0.000000e+00> : vector<2x8x8xf32>
    %35 = tpu.matmul %30, %32, %cst_8 {dimension_numbers = #tpu.dot_dimension_numbers<[2], [2], [1], [1], [0, 0, 0, 1, 1, 1], [0], [0]>} : vector<2x8x16xbf16>, vector<2x8x16xbf16>, vector<2x8x8xf32> -> vector<2x8x8xf32>
    "tpu.trace_stop"() : () -> ()
    %cst_9 = arith.constant dense<0xFF800000> : vector<2x8xf32>
    %36 = vector.multi_reduction <maximumf>, %35, %cst_9 [2] : vector<2x8x8xf32> to vector<2x8xf32>
    %37 = vector.shape_cast %36 : vector<2x8xf32> to vector<2x8x1xf32>
    %38 = vector.broadcast %37 : vector<2x8x1xf32> to vector<2x8x8xf32>
    %39 = arith.subf %35, %38 : vector<2x8x8xf32>
    %40 = math.exp %39 : vector<2x8x8xf32>
    %cst_10 = arith.constant dense<0.000000e+00> : vector<2x8xf32>
    %41 = vector.multi_reduction <add>, %40, %cst_10 [2] : vector<2x8x8xf32> to vector<2x8xf32>
    %42 = vector.shape_cast %41 : vector<2x8xf32> to vector<2x8x1xf32>
    %43 = tpu.reciprocal %42 : vector<2x8x1xf32> -> vector<2x8x1xf32>
    %44 = vector.broadcast %43 : vector<2x8x1xf32> to vector<2x8x8xf32>
    %45 = arith.mulf %40, %44 : vector<2x8x8xf32>
    %46 = arith.truncf %45 : vector<2x8x8xf32> to vector<2x8x8xbf16>
    "tpu.trace_start"() <{level = 10 : i32, message = "bqk,bkd->bqd"}> : () -> ()
    %cst_11 = arith.constant dense<0.000000e+00> : vector<2x8x16xf32>
    %47 = tpu.matmul %46, %34, %cst_11 {dimension_numbers = #tpu.dot_dimension_numbers<[2], [1], [1], [2], [0, 0, 0, 1, 1, 2], [0], [0]>} : vector<2x8x8xbf16>, vector<2x8x16xbf16>, vector<2x8x16xf32> -> vector<2x8x16xf32>
    "tpu.trace_stop"() : () -> ()
    %48 = tpu.concatenate %28, %47 in 2 : vector<2x8x16xf32>, vector<2x8x16xf32> -> vector<2x8x32xf32>
    %49 = vector.shape_cast %48 : vector<2x8x32xf32> to vector<16x32xf32>
    %50 = arith.truncf %49 : vector<16x32xf32> to vector<16x32xbf16>
    %c0_12 = arith.constant 0 : index
    %c0_13 = arith.constant 0 : index
    %51 = vector.load %arg2[%c0_12, %c0_13] : memref<32x32xbf16, #tpu.memory_space<vmem>>, vector<32x32xbf16>
    %cst_14 = arith.constant dense<0.000000e+00> : vector<16x32xf32>
    %52 = tpu.matmul %50, %51, %cst_14 {dimension_numbers = #tpu.dot_dimension_numbers<[1], [0], [0], [1], [0, 0, 1, 1], [], []>} : vector<16x32xbf16>, vector<32x32xbf16>, vector<16x32xf32> -> vector<16x32xf32>
    %c0_15 = arith.constant 0 : index
    %c0_16 = arith.constant 0 : index
    %53 = vector.load %arg3[%c0_15, %c0_16] : memref<1x32xf32, #tpu.memory_space<vmem>>, vector<1x32xf32>
    %54 = vector.broadcast %53 : vector<1x32xf32> to vector<16x32xf32>
    %55 = arith.addf %52, %54 : vector<16x32xf32>
    %c0_17 = arith.constant 0 : index
    %c0_18 = arith.constant 0 : index
    %56 = vector.load %arg4[%c0_17, %c0_18] : memref<16x32xf32, #tpu.memory_space<vmem>>, vector<16x32xf32>
    tpu.vector_store %arg4[%c0_17, %c0_18], %55 {strides = array<i32>} : memref<16x32xf32, #tpu.memory_space<vmem>>, vector<16x32xf32>,
    return
  }
}

</mosaic_0001>

<llo_original>
// kernel: tpu_custom_call.1
$region0: #{tpu_custom_call.1}
  #allocation0 [shape = 'u32[]', space=smem, size = 0x4, offset = 0x4, fixed_abs, tag = 'smem constant byte address 0x4 - core index']
  #allocation1 [shape = 'u32[144,128]{1,0:T(1,128)}', space=vmem, size = 0x12000, scoped, tag = 'internal scratch']
  %s0 = inlined_call_operand.hbm [shape: f32[16,32], index: 0, kind: input, shape index: {}]
  %s1 = inlined_call_operand.hbm [shape: bf16[32,96], index: 1, kind: input, shape index: {}]
  %s2 = inlined_call_operand.hbm [shape: bf16[32,32], index: 2, kind: input, shape index: {}]
  %s3 = inlined_call_operand.vmem [shape: f32[1,32], index: 3, kind: input, shape index: {}]
  %s4 = inlined_call_operand.hbm [shape: f32[16,32], index: 4, kind: output, shape index: {}]
  %s5 = sld [smem:[#allocation0]]
  $region38: #{tpu_custom_call.1} parent=0
    _
  %s7 = ssub.s32 1, %s5
  %s8 = scalar_select 0, %s7, %s5
  $region1: #{tpu_custom_call.1} parent=0
    #allocation2 [shape = 'u8[8192]{0}', space=vmem, size = 0x2000, scoped, tag = 'input window, operand 0, single buffered']
    #allocation3 [shape = 's32[1]{0}', space=sflag, size = 0x4, scoped, tag = 'scoped memory for tpu_custom_call.1']
    #allocation4 [shape = 's32[1]{0}', space=sflag, size = 0x4, scoped, tag = 'scoped memory for tpu_custom_call.1']
    #allocation5 [shape = 'u8[8192]{0}', space=vmem, size = 0x2000, scoped, tag = 'input window, operand 1, single buffered']
    #allocation6 [shape = 's32[1]{0}', space=sflag, size = 0x4, scoped, tag = 'scoped memory for tpu_custom_call.1']
    #allocation7 [shape = 'u8[8192]{0}', space=vmem, size = 0x2000, scoped, tag = 'input window, operand 2, single buffered']
    #allocation8 [shape = 'u8[8192]{0}', space=vmem, size = 0x2000, scoped, tag = 'output window, operand 0, single buffered']
    %9 = vsyncpa [#allocation3], 0
    %10 = vsyncpa [#allocation6], 0
    %11 = vsyncpa [#allocation4], 0
    // Predicated region
    $region2: #{tpu_custom_call.1} parent=1 // pred_check
      _
    $region3: #{tpu_custom_call.1} parent=1 // pred_check_branch
      %13 = sbr.rel (0) target = $region5
    $region4: #{tpu_custom_call.1} parent=1 // pred_region
      %s15 = ssub.s32 256, 256
      %16 = vsyncadd [#allocation3], %s15
      %s17 = sshll.u32 [#allocation2], 4
      %s18 = int_to_ptr.vmem [resolvable:$true] %s17
      %23 = dma.hbm_to_vmem [thread:$0]  %s0, 256, %s18, [#allocation3], 128, 128, 8
    $region5: #{tpu_custom_call.1} parent=1 // pred_fallthru
      _
    // Predicated region
    $region6: #{tpu_custom_call.1} parent=1 // pred_check
      _
    $region7: #{tpu_custom_call.1} parent=1 // pred_check_branch
      %25 = sbr.rel (0) target = $region9
    $region8: #{tpu_custom_call.1} parent=1 // pred_region
      %s27 = ssub.s32 256, 256
      %28 = vsyncadd [#allocation6], %s27
      %s29 = sshll.u32 [#allocation5], 4
      %s30 = int_to_ptr.vmem [resolvable:$true] %s29
      %35 = dma.hbm_to_vmem [thread:$0]  %s1, 256, %s30, [#allocation6], 64, 64, 4
    $region9: #{tpu_custom_call.1} parent=1 // pred_fallthru
      _
    // Predicated region
    $region10: #{tpu_custom_call.1} parent=1 // pred_check
      _
    $region11: #{tpu_custom_call.1} parent=1 // pred_check_branch
      %37 = sbr.rel (0) target = $region13
    $region12: #{tpu_custom_call.1} parent=1 // pred_region
      %s39 = ssub.s32 256, 256
      %40 = vsyncadd [#allocation6], %s39
      %s41 = sshll.u32 [#allocation7], 4
      %s42 = int_to_ptr.vmem [resolvable:$true] %s41
      %47 = dma.hbm_to_vmem [thread:$0]  %s2, 256, %s42, [#allocation6], 64, 64, 4
    $region13: #{tpu_custom_call.1} parent=1 // pred_fallthru
      _
    // Predicated region
    $region14: #{tpu_custom_call.1} parent=1 // pred_check
      _
    $region15: #{tpu_custom_call.1} parent=1 // pred_check_branch
      %49 = sbr.rel (0) target = $region17
    $region16: #{tpu_custom_call.1} parent=1 // pred_region
      _
    $region17: #{tpu_custom_call.1} parent=1 // pred_fallthru
      _
    // Predicated region
    $region18: #{tpu_custom_call.1} parent=1 // pred_check
      _
    $region19: #{tpu_custom_call.1} parent=1 // pred_check_branch
      %51 = sbr.rel (0) target = $region21
    $region20: #{tpu_custom_call.1} parent=1 // pred_region
      %52 = dma.done [#allocation3], 256
    $region21: #{tpu_custom_call.1} parent=1 // pred_fallthru
      _
    // Predicated region
    $region22: #{tpu_custom_call.1} parent=1 // pred_check
      _
    $region23: #{tpu_custom_call.1} parent=1 // pred_check_branch
      %54 = sbr.rel (0) target = $region25
    $region24: #{tpu_custom_call.1} parent=1 // pred_region
      %55 = dma.done [#allocation6], 256
    $region25: #{tpu_custom_call.1} parent=1 // pred_fallthru
      _
    // Predicated region
    $region26: #{tpu_custom_call.1} parent=1 // pred_check
      _
    $region27: #{tpu_custom_call.1} parent=1 // pred_check_branch
      %57 = sbr.rel (0) target = $region29
    $region28: #{tpu_custom_call.1} parent=1 // pred_region
      %58 = dma.done [#allocation6], 256
    $region29: #{tpu_custom_call.1} parent=1 // pred_fallthru
      _
    %v60 = vld [vmem:[#allocation2] sm:$0xff]
    %v61 = vld [vmem:[#allocation2 + $0x8] sm:$0xff]
    %v62 = vpack.c.bf16 %v61, %v60
    %v63 = vld [vmem:[#allocation5] sm:$0xf]
    %v64 = vld [vmem:[#allocation5 + $0x4] sm:$0xf]
    %v65 = vld [vmem:[#allocation5 + $0x8] sm:$0xf]
    %v66 = vld [vmem:[#allocation5 + $0xc] sm:$0xf]
    %v71 = vunpack.c.l.b16 %v63
    %v72 = vunpack.c.l.b16 %v64
    %v73 = vunpack.c.l.b16 %v65
    %v74 = vunpack.c.l.b16 %v66
    %v75 = vpack.c.b16 %v72, %v71
    %v76 = vpack.c.b16 %v74, %v73
    %vm79 = vcmask 261120
    %v81 = vsel %vm79, %v62, 0
    %83 = vmatprep.subr.bf16.mxu0 0
    %84 = vmatpush1.bf16.msra.mxu0 0
    %85 = vmatprep.subr.bf16.mxu0 0
    %86 = vmatpush1.bf16.msra.mxu0 0
    %87 = vmatprep.subr.bf16.mxu0 0
    %88 = vmatpush1.bf16.msra.mxu0 0
    %89 = vmatprep.subr.bf16.mxu0 0
    %90 = vmatpush1.bf16.msra.mxu0 0
    %91 = vmatprep.subr.bf16.mxu0 0
    %92 = vmatpush1.bf16.msra.mxu0 0
    %93 = vmatprep.subr.bf16.mxu0 0
    %94 = vmatpush1.bf16.msra.mxu0 0
    %95 = vmatprep.subr.bf16.mxu0 0
    %96 = vmatpush1.bf16.msra.mxu0 %v76
    %97 = vmatprep.subr.bf16.mxu0 0
    %98 = vmatpush1.bf16.msra.mxu0 %v75
    %99 = vmatprep.subr.bf16.mxu0 0
    %100 = vmatpush2.bf16.msra.mxu0 0
    %101 = vmatprep.subr.bf16.mxu0 0
    %102 = vmatpush2.bf16.msra.mxu0 0
    %103 = vmatprep.subr.bf16.mxu0 0
    %104 = vmatpush2.bf16.msra.mxu0 0
    %105 = vmatprep.subr.bf16.mxu0 0
    %106 = vmatpush2.bf16.msra.mxu0 0
    %107 = vmatprep.subr.bf16.mxu0 0
    %108 = vmatpush2.bf16.msra.mxu0 0
    %109 = vmatprep.subr.bf16.mxu0 0
    %110 = vmatpush2.bf16.msra.mxu0 0
    %111 = vmatprep.subr.bf16.mxu0 0
    %112 = vmatpush2.bf16.msra.mxu0 0
    %113 = vmatprep.subr.bf16.mxu0 0
    %114 = vmatpush2.bf16.msra.mxu0 0
    %115 = vmatprep.mubr.bf16.mxu0 0
    %116 = vmatmul.mubr.bf16.gmra.mxu0 %v81
    %v117 = vpop.f32.mrf.mxu0
    %v118 = vadd.f32 0.0, %v117
    %v119 = vpop.f32.mrf.mxu0
    %v120 = vpop.f32.mrf.mxu0
    %v121 = vadd.f32 0.0, %v120
    %v122 = vpop.f32.mrf.mxu0
    %123 = vdwg.mxu0
    %v124 = vmul.f32 %v118, 0.25
    %v125 = vmul.f32 %v121, 0.25
    %v126 = vpack.c.bf16 %v124, %v124
    %v127 = vpack.c.bf16 %v125, %v125
    %v128 = vpack.c.bf16 %v118, %v118
    %v129 = vpack.c.bf16 %v121, %v121
    %131 = vrot.lane.b32.xlu0 %v128, 96
    %v132 = vpop.permute.xlu0 %131
    %vm133 = vcmask 130048
    %v135 = vsel %vm133, %v126, 0
    %v138 = vsel %vm133, %v132, 0
    %140 = vmatprep.subr.bf16.mxu0 0
    %141 = vmatpush1.bf16.xpose.msra.mxu0 0
    %142 = vmatprep.subr.bf16.mxu0 0
    %143 = vmatpush1.bf16.xpose.msra.mxu0 0
    %144 = vmatprep.subr.bf16.mxu0 0
    %145 = vmatpush1.bf16.xpose.msra.mxu0 0
    %146 = vmatprep.subr.bf16.mxu0 0
    %147 = vmatpush1.bf16.xpose.msra.mxu0 0
    %148 = vmatprep.subr.bf16.mxu0 0
    %149 = vmatpush1.bf16.xpose.msra.mxu0 0
    %150 = vmatprep.subr.bf16.mxu0 0
    %151 = vmatpush1.bf16.xpose.msra.mxu0 0
    %152 = vmatprep.subr.bf16.mxu0 0
    %153 = vmatpush1.bf16.xpose.msra.mxu0 0
    %154 = vmatprep.subr.bf16.mxu0 0
    %155 = vmatpush1.bf16.xpose.msra.mxu0 %v138
    %156 = vmatprep.subr.bf16.mxu0 0
    %157 = vmatpush2.bf16.xpose.msra.mxu0 0
    %158 = vmatprep.subr.bf16.mxu0 0
    %159 = vmatpush2.bf16.xpose.msra.mxu0 0
    %160 = vmatprep.subr.bf16.mxu0 0
    %161 = vmatpush2.bf16.xpose.msra.mxu0 0
    %162 = vmatprep.subr.bf16.mxu0 0
    %163 = vmatpush2.bf16.xpose.msra.mxu0 0
    %164 = vmatprep.subr.bf16.mxu0 0
    %165 = vmatpush2.bf16.xpose.msra.mxu0 0
    %166 = vmatprep.subr.bf16.mxu0 0
    %167 = vmatpush2.bf16.xpose.msra.mxu0 0
    %168 = vmatprep.subr.bf16.mxu0 0
    %169 = vmatpush2.bf16.xpose.msra.mxu0 0
    %170 = vmatprep.subr.bf16.mxu0 0
    %171 = vmatpush2.bf16.xpose.msra.mxu0 0
    %172 = vmatprep.mubr.bf16.mxu0 0
    %173 = vmatmul.mubr.bf16.gmra.mxu0 %v135
    %v174 = vpop.f32.mrf.mxu0
    %v175 = vadd.f32 0.0, %v174
    %v176 = vpop.f32.mrf.mxu0
    %v177 = vpop.f32.mrf.mxu0
    %v178 = vpop.f32.mrf.mxu0
    %179 = vdwg.mxu0
    %181 = vrot.lane.b32.xlu0 %v129, 96
    %v182 = vpop.permute.xlu0 %181
    %v184 = vsel %vm133, %v127, 0
    %v187 = vsel %vm133, %v182, 0
    %189 = vmatprep.subr.bf16.mxu0 0
    %190 = vmatpush1.bf16.xpose.msra.mxu0 0
    %191 = vmatprep.subr.bf16.mxu0 0
    %192 = vmatpush1.bf16.xpose.msra.mxu0 0
    %193 = vmatprep.subr.bf16.mxu0 0
    %194 = vmatpush1.bf16.xpose.msra.mxu0 0
    %195 = vmatprep.subr.bf16.mxu0 0
    %196 = vmatpush1.bf16.xpose.msra.mxu0 0
    %197 = vmatprep.subr.bf16.mxu0 0
    %198 = vmatpush1.bf16.xpose.msra.mxu0 0
    %199 = vmatprep.subr.bf16.mxu0 0
    %200 = vmatpush1.bf16.xpose.msra.mxu0 0
    %201 = vmatprep.subr.bf16.mxu0 0
    %202 = vmatpush1.bf16.xpose.msra.mxu0 0
    %203 = vmatprep.subr.bf16.mxu0 0
    %204 = vmatpush1.bf16.xpose.msra.mxu0 %v187
    %205 = vmatprep.subr.bf16.mxu0 0
    %206 = vmatpush2.bf16.xpose.msra.mxu0 0
    %207 = vmatprep.subr.bf16.mxu0 0
    %208 = vmatpush2.bf16.xpose.msra.mxu0 0
    %209 = vmatprep.subr.bf16.mxu0 0
    %210 = vmatpush2.bf16.xpose.msra.mxu0 0
    %211 = vmatprep.subr.bf16.mxu0 0
    %212 = vmatpush2.bf16.xpose.msra.mxu0 0
    %213 = vmatprep.subr.bf16.mxu0 0
    %214 = vmatpush2.bf16.xpose.msra.mxu0 0
    %215 = vmatprep.subr.bf16.mxu0 0
    %216 = vmatpush2.bf16.xpose.msra.mxu0 0
    %217 = vmatprep.subr.bf16.mxu0 0
    %218 = vmatpush2.bf16.xpose.msra.mxu0 0
    %219 = vmatprep.subr.bf16.mxu0 0
    %220 = vmatpush2.bf16.xpose.msra.mxu0 0
    %221 = vmatprep.mubr.bf16.mxu0 0
    %222 = vmatmul.mubr.bf16.gmra.mxu0 %v184
    %v223 = vpop.f32.mrf.mxu0
    %v224 = vadd.f32 0.0, %v223
    %v225 = vpop.f32.mrf.mxu0
    %v226 = vpop.f32.mrf.mxu0
    %v227 = vpop.f32.mrf.mxu0
    %228 = vdwg.mxu0
    %vm229 = vcmask 64512
    %v230 = vsel %vm229, %v175, -inf
    %231 = vmax.xlane.f32.xlu0 %v230
    %v232 = vpop.xlane.xlu0 %231
    %v233 = vsel %vm229, %v224, -inf
    %234 = vmax.xlane.f32.xlu0 %v233
    %v235 = vpop.xlane.xlu0 %234
    %v236 = vsub.f32 %v175, %v232
    %v237 = vsub.f32 %v224, %v235
    %v238 = vmul.f32 %v236, 1.442695
    %v239 = vpow.pop %v238
    %v240 = vmul.f32 %v237, 1.442695
    %v241 = vpow.pop %v240
    %v242 = vsel %vm229, %v239, 0.0
    %243 = vadd.xlane.f32.xlu0 %v242
    %v244 = vpop.xlane.xlu0 %243
    %v245 = vsel %vm229, %v241, 0.0
    %246 = vadd.xlane.f32.xlu0 %v245
    %v247 = vpop.xlane.xlu0 %246
    %v248 = vrcp.pop %v244
    %v249 = vrcp.pop %v247
    %v250 = vmul.f32 %v239, %v248
    %v251 = vmul.f32 %v241, %v249
    %v252 = vpack.c.bf16 %v250, %v250
    %v253 = vpack.c.bf16 %v251, %v251
    %254 = vrot.lane.b32.xlu0 %v128, 64
    %v255 = vpop.permute.xlu0 %254
    %v257 = vsel %vm229, %v252, 0
    %vm259 = vcmask 1043456
    %v261 = vsel %vm259, %v255, 0
    %263 = vmatprep.subr.bf16.mxu0 0
    %264 = vmatpush1.bf16.msra.mxu0 0
    %265 = vmatprep.subr.bf16.mxu0 0
    %266 = vmatpush1.bf16.msra.mxu0 0
    %267 = vmatprep.subr.bf16.mxu0 0
    %268 = vmatpush1.bf16.msra.mxu0 0
    %269 = vmatprep.subr.bf16.mxu0 0
    %270 = vmatpush1.bf16.msra.mxu0 0
    %271 = vmatprep.subr.bf16.mxu0 0
    %272 = vmatpush1.bf16.msra.mxu0 0
    %273 = vmatprep.subr.bf16.mxu0 0
    %274 = vmatpush1.bf16.msra.mxu0 0
    %275 = vmatprep.subr.bf16.mxu0 0
    %276 = vmatpush1.bf16.msra.mxu0 0
    %277 = vmatprep.subr.bf16.mxu0 0
    %278 = vmatpush1.bf16.msra.mxu0 %v261
    %279 = vmatprep.subr.bf16.mxu0 0
    %280 = vmatpush2.bf16.msra.mxu0 0
    %281 = vmatprep.subr.bf16.mxu0 0
    %282 = vmatpush2.bf16.msra.mxu0 0
    %283 = vmatprep.subr.bf16.mxu0 0
    %284 = vmatpush2.bf16.msra.mxu0 0
    %285 = vmatprep.subr.bf16.mxu0 0
    %286 = vmatpush2.bf16.msra.mxu0 0
    %287 = vmatprep.subr.bf16.mxu0 0
    %288 = vmatpush2.bf16.msra.mxu0 0
    %289 = vmatprep.subr.bf16.mxu0 0
    %290 = vmatpush2.bf16.msra.mxu0 0
    %291 = vmatprep.subr.bf16.mxu0 0
    %292 = vmatpush2.bf16.msra.mxu0 0
    %293 = vmatprep.subr.bf16.mxu0 0
    %294 = vmatpush2.bf16.msra.mxu0 0
    %295 = vmatprep.mubr.bf16.mxu0 0
    %296 = vmatmul.mubr.bf16.gmra.mxu0 %v257
    %v297 = vpop.f32.mrf.mxu0
    %v298 = vadd.f32 0.0, %v297
    %v299 = vpop.f32.mrf.mxu0
    %v300 = vpop.f32.mrf.mxu0
    %v301 = vpop.f32.mrf.mxu0
    %302 = vdwg.mxu0
    %303 = vrot.lane.b32.xlu0 %v129, 64
    %v304 = vpop.permute.xlu0 %303
    %v306 = vsel %vm229, %v253, 0
    %v309 = vsel %vm259, %v304, 0
    %311 = vmatprep.subr.bf16.mxu0 0
    %312 = vmatpush1.bf16.msra.mxu0 0
    %313 = vmatprep.subr.bf16.mxu0 0
    %314 = vmatpush1.bf16.msra.mxu0 0
    %315 = vmatprep.subr.bf16.mxu0 0
    %316 = vmatpush1.bf16.msra.mxu0 0
    %317 = vmatprep.subr.bf16.mxu0 0
    %318 = vmatpush1.bf16.msra.mxu0 0
    %319 = vmatprep.subr.bf16.mxu0 0
    %320 = vmatpush1.bf16.msra.mxu0 0
    %321 = vmatprep.subr.bf16.mxu0 0
    %322 = vmatpush1.bf16.msra.mxu0 0
    %323 = vmatprep.subr.bf16.mxu0 0
    %324 = vmatpush1.bf16.msra.mxu0 0
    %325 = vmatprep.subr.bf16.mxu0 0
    %326 = vmatpush1.bf16.msra.mxu0 %v309
    %327 = vmatprep.subr.bf16.mxu0 0
    %328 = vmatpush2.bf16.msra.mxu0 0
    %329 = vmatprep.subr.bf16.mxu0 0
    %330 = vmatpush2.bf16.msra.mxu0 0
    %331 = vmatprep.subr.bf16.mxu0 0
    %332 = vmatpush2.bf16.msra.mxu0 0
    %333 = vmatprep.subr.bf16.mxu0 0
    %334 = vmatpush2.bf16.msra.mxu0 0
    %335 = vmatprep.subr.bf16.mxu0 0
    %336 = vmatpush2.bf16.msra.mxu0 0
    %337 = vmatprep.subr.bf16.mxu0 0
    %338 = vmatpush2.bf16.msra.mxu0 0
    %339 = vmatprep.subr.bf16.mxu0 0
    %340 = vmatpush2.bf16.msra.mxu0 0
    %341 = vmatprep.subr.bf16.mxu0 0
    %342 = vmatpush2.bf16.msra.mxu0 0
    %343 = vmatprep.mubr.bf16.mxu0 0
    %344 = vmatmul.mubr.bf16.gmra.mxu0 %v306
    %v345 = vpop.f32.mrf.mxu0
    %v346 = vadd.f32 0.0, %v345
    %v347 = vpop.f32.mrf.mxu0
    %v348 = vpop.f32.mrf.mxu0
    %v349 = vpop.f32.mrf.mxu0
    %350 = vdwg.mxu0
    %352 = vrot.lane.b32.xlu0 %v126, 112
    %v353 = vpop.permute.xlu0 %352
    %354 = vrot.lane.b32.xlu0 %v128, 80
    %v355 = vpop.permute.xlu0 %354
    %v357 = vsel %vm133, %v353, 0
    %v360 = vsel %vm133, %v355, 0
    %362 = vmatprep.subr.bf16.mxu0 0
    %363 = vmatpush1.bf16.xpose.msra.mxu0 0
    %364 = vmatprep.subr.bf16.mxu0 0
    %365 = vmatpush1.bf16.xpose.msra.mxu0 0
    %366 = vmatprep.subr.bf16.mxu0 0
    %367 = vmatpush1.bf16.xpose.msra.mxu0 0
    %368 = vmatprep.subr.bf16.mxu0 0
    %369 = vmatpush1.bf16.xpose.msra.mxu0 0
    %370 = vmatprep.subr.bf16.mxu0 0
    %371 = vmatpush1.bf16.xpose.msra.mxu0 0
    %372 = vmatprep.subr.bf16.mxu0 0
    %373 = vmatpush1.bf16.xpose.msra.mxu0 0
    %374 = vmatprep.subr.bf16.mxu0 0
    %375 = vmatpush1.bf16.xpose.msra.mxu0 0
    %376 = vmatprep.subr.bf16.mxu0 0
    %377 = vmatpush1.bf16.xpose.msra.mxu0 %v360
    %378 = vmatprep.subr.bf16.mxu0 0
    %379 = vmatpush2.bf16.xpose.msra.mxu0 0
    %380 = vmatprep.subr.bf16.mxu0 0
    %381 = vmatpush2.bf16.xpose.msra.mxu0 0
    %382 = vmatprep.subr.bf16.mxu0 0
    %383 = vmatpush2.bf16.xpose.msra.mxu0 0
    %384 = vmatprep.subr.bf16.mxu0 0
    %385 = vmatpush2.bf16.xpose.msra.mxu0 0
    %386 = vmatprep.subr.bf16.mxu0 0
    %387 = vmatpush2.bf16.xpose.msra.mxu0 0
    %388 = vmatprep.subr.bf16.mxu0 0
    %389 = vmatpush2.bf16.xpose.msra.mxu0 0
    %390 = vmatprep.subr.bf16.mxu0 0
    %391 = vmatpush2.bf16.xpose.msra.mxu0 0
    %392 = vmatprep.subr.bf16.mxu0 0
    %393 = vmatpush2.bf16.xpose.msra.mxu0 0
    %394 = vmatprep.mubr.bf16.mxu0 0
    %395 = vmatmul.mubr.bf16.gmra.mxu0 %v357
    %v396 = vpop.f32.mrf.mxu0
    %v397 = vadd.f32 0.0, %v396
    %v398 = vpop.f32.mrf.mxu0
    %v399 = vpop.f32.mrf.mxu0
    %v400 = vpop.f32.mrf.mxu0
    %401 = vdwg.mxu0
    %403 = vrot.lane.b32.xlu0 %v127, 112
    %v404 = vpop.permute.xlu0 %403
    %405 = vrot.lane.b32.xlu0 %v129, 80
    %v406 = vpop.permute.xlu0 %405
    %v408 = vsel %vm133, %v404, 0
    %v411 = vsel %vm133, %v406, 0
    %413 = vmatprep.subr.bf16.mxu0 0
    %414 = vmatpush1.bf16.xpose.msra.mxu0 0
    %415 = vmatprep.subr.bf16.mxu0 0
    %416 = vmatpush1.bf16.xpose.msra.mxu0 0
    %417 = vmatprep.subr.bf16.mxu0 0
    %418 = vmatpush1.bf16.xpose.msra.mxu0 0
    %419 = vmatprep.subr.bf16.mxu0 0
    %420 = vmatpush1.bf16.xpose.msra.mxu0 0
    %421 = vmatprep.subr.bf16.mxu0 0
    %422 = vmatpush1.bf16.xpose.msra.mxu0 0
    %423 = vmatprep.subr.bf16.mxu0 0
    %424 = vmatpush1.bf16.xpose.msra.mxu0 0
    %425 = vmatprep.subr.bf16.mxu0 0
    %426 = vmatpush1.bf16.xpose.msra.mxu0 0
    %427 = vmatprep.subr.bf16.mxu0 0
    %428 = vmatpush1.bf16.xpose.msra.mxu0 %v411
    %429 = vmatprep.subr.bf16.mxu0 0
    %430 = vmatpush2.bf16.xpose.msra.mxu0 0
    %431 = vmatprep.subr.bf16.mxu0 0
    %432 = vmatpush2.bf16.xpose.msra.mxu0 0
    %433 = vmatprep.subr.bf16.mxu0 0
    %434 = vmatpush2.bf16.xpose.msra.mxu0 0
    %435 = vmatprep.subr.bf16.mxu0 0
    %436 = vmatpush2.bf16.xpose.msra.mxu0 0
    %437 = vmatprep.subr.bf16.mxu0 0
    %438 = vmatpush2.bf16.xpose.msra.mxu0 0
    %439 = vmatprep.subr.bf16.mxu0 0
    %440 = vmatpush2.bf16.xpose.msra.mxu0 0
    %441 = vmatprep.subr.bf16.mxu0 0
    %442 = vmatpush2.bf16.xpose.msra.mxu0 0
    %443 = vmatprep.subr.bf16.mxu0 0
    %444 = vmatpush2.bf16.xpose.msra.mxu0 0
    %445 = vmatprep.mubr.bf16.mxu0 0
    %446 = vmatmul.mubr.bf16.gmra.mxu0 %v408
    %v447 = vpop.f32.mrf.mxu0
    %v448 = vadd.f32 0.0, %v447
    %v449 = vpop.f32.mrf.mxu0
    %v450 = vpop.f32.mrf.mxu0
    %v451 = vpop.f32.mrf.mxu0
    %452 = vdwg.mxu0
    %v453 = vsel %vm229, %v397, -inf
    %454 = vmax.xlane.f32.xlu0 %v453
    %v455 = vpop.xlane.xlu0 %454
    %v456 = vsel %vm229, %v448, -inf
    %457 = vmax.xlane.f32.xlu0 %v456
    %v458 = vpop.xlane.xlu0 %457
    %v459 = vsub.f32 %v397, %v455
    %v460 = vsub.f32 %v448, %v458
    %v461 = vmul.f32 %v459, 1.442695
    %v462 = vpow.pop %v461
    %v463 = vmul.f32 %v460, 1.442695
    %v464 = vpow.pop %v463
    %v465 = vsel %vm229, %v462, 0.0
    %466 = vadd.xlane.f32.xlu0 %v465
    %v467 = vpop.xlane.xlu0 %466
    %v468 = vsel %vm229, %v464, 0.0
    %469 = vadd.xlane.f32.xlu0 %v468
    %v470 = vpop.xlane.xlu0 %469
    %v471 = vrcp.pop %v467
    %v472 = vrcp.pop %v470
    %v473 = vmul.f32 %v462, %v471
    %v474 = vmul.f32 %v464, %v472
    %v475 = vpack.c.bf16 %v473, %v473
    %v476 = vpack.c.bf16 %v474, %v474
    %477 = vrot.lane.b32.xlu0 %v128, 48
    %v478 = vpop.permute.xlu0 %477
    %v480 = vsel %vm229, %v475, 0
    %v483 = vsel %vm259, %v478, 0
    %485 = vmatprep.subr.bf16.mxu0 0
    %486 = vmatpush1.bf16.msra.mxu0 0
    %487 = vmatprep.subr.bf16.mxu0 0
    %488 = vmatpush1.bf16.msra.mxu0 0
    %489 = vmatprep.subr.bf16.mxu0 0
    %490 = vmatpush1.bf16.msra.mxu0 0
    %491 = vmatprep.subr.bf16.mxu0 0
    %492 = vmatpush1.bf16.msra.mxu0 0
    %493 = vmatprep.subr.bf16.mxu0 0
    %494 = vmatpush1.bf16.msra.mxu0 0
    %495 = vmatprep.subr.bf16.mxu0 0
    %496 = vmatpush1.bf16.msra.mxu0 0
    %497 = vmatprep.subr.bf16.mxu0 0
    %498 = vmatpush1.bf16.msra.mxu0 0
    %499 = vmatprep.subr.bf16.mxu0 0
    %500 = vmatpush1.bf16.msra.mxu0 %v483
    %501 = vmatprep.subr.bf16.mxu0 0
    %502 = vmatpush2.bf16.msra.mxu0 0
    %503 = vmatprep.subr.bf16.mxu0 0
    %504 = vmatpush2.bf16.msra.mxu0 0
    %505 = vmatprep.subr.bf16.mxu0 0
    %506 = vmatpush2.bf16.msra.mxu0 0
    %507 = vmatprep.subr.bf16.mxu0 0
    %508 = vmatpush2.bf16.msra.mxu0 0
    %509 = vmatprep.subr.bf16.mxu0 0
    %510 = vmatpush2.bf16.msra.mxu0 0
    %511 = vmatprep.subr.bf16.mxu0 0
    %512 = vmatpush2.bf16.msra.mxu0 0
    %513 = vmatprep.subr.bf16.mxu0 0
    %514 = vmatpush2.bf16.msra.mxu0 0
    %515 = vmatprep.subr.bf16.mxu0 0
    %516 = vmatpush2.bf16.msra.mxu0 0
    %517 = vmatprep.mubr.bf16.mxu0 0
    %518 = vmatmul.mubr.bf16.gmra.mxu0 %v480
    %v519 = vpop.f32.mrf.mxu0
    %v520 = vadd.f32 0.0, %v519
    %v521 = vpop.f32.mrf.mxu0
    %v522 = vpop.f32.mrf.mxu0
    %v523 = vpop.f32.mrf.mxu0
    %524 = vdwg.mxu0
    %525 = vrot.lane.b32.xlu0 %v129, 48
    %v526 = vpop.permute.xlu0 %525
    %v528 = vsel %vm229, %v476, 0
    %v531 = vsel %vm259, %v526, 0
    %533 = vmatprep.subr.bf16.mxu0 0
    %534 = vmatpush1.bf16.msra.mxu0 0
    %535 = vmatprep.subr.bf16.mxu0 0
    %536 = vmatpush1.bf16.msra.mxu0 0
    %537 = vmatprep.subr.bf16.mxu0 0
    %538 = vmatpush1.bf16.msra.mxu0 0
    %539 = vmatprep.subr.bf16.mxu0 0
    %540 = vmatpush1.bf16.msra.mxu0 0
    %541 = vmatprep.subr.bf16.mxu0 0
    %542 = vmatpush1.bf16.msra.mxu0 0
    %543 = vmatprep.subr.bf16.mxu0 0
    %544 = vmatpush1.bf16.msra.mxu0 0
    %545 = vmatprep.subr.bf16.mxu0 0
    %546 = vmatpush1.bf16.msra.mxu0 0
    %547 = vmatprep.subr.bf16.mxu0 0
    %548 = vmatpush1.bf16.msra.mxu0 %v531
    %549 = vmatprep.subr.bf16.mxu0 0
    %550 = vmatpush2.bf16.msra.mxu0 0
    %551 = vmatprep.subr.bf16.mxu0 0
    %552 = vmatpush2.bf16.msra.mxu0 0
    %553 = vmatprep.subr.bf16.mxu0 0
    %554 = vmatpush2.bf16.msra.mxu0 0
    %555 = vmatprep.subr.bf16.mxu0 0
    %556 = vmatpush2.bf16.msra.mxu0 0
    %557 = vmatprep.subr.bf16.mxu0 0
    %558 = vmatpush2.bf16.msra.mxu0 0
    %559 = vmatprep.subr.bf16.mxu0 0
    %560 = vmatpush2.bf16.msra.mxu0 0
    %561 = vmatprep.subr.bf16.mxu0 0
    %562 = vmatpush2.bf16.msra.mxu0 0
    %563 = vmatprep.subr.bf16.mxu0 0
    %564 = vmatpush2.bf16.msra.mxu0 0
    %565 = vmatprep.mubr.bf16.mxu0 0
    %566 = vmatmul.mubr.bf16.gmra.mxu0 %v528
    %v567 = vpop.f32.mrf.mxu0
    %v568 = vadd.f32 0.0, %v567
    %v569 = vpop.f32.mrf.mxu0
    %v570 = vpop.f32.mrf.mxu0
    %v571 = vpop.f32.mrf.mxu0
    %572 = vdwg.mxu0
    %575 = vrot.lane.b32.xlu0 %v520, 16
    %v576 = vpop.permute.xlu0 %575
    %577 = vrot.lane.b32.xlu0 %v568, 16
    %v578 = vpop.permute.xlu0 %577
    %v581 = vsel %vm133, %v298, %v576
    %v582 = vsel %vm133, %v346, %v578
    %v583 = vpack.c.bf16 %v582, %v581
    %v584 = vld [vmem:[#allocation7] sm:$0xf]
    %v585 = vld [vmem:[#allocation7 + $0x4] sm:$0xf]
    %v586 = vld [vmem:[#allocation7 + $0x8] sm:$0xf]
    %v587 = vld [vmem:[#allocation7 + $0xc] sm:$0xf]
    %v588 = vld [vmem:[%s3] sm:$0x1]
    %v590 = vlaneseq
    %v591 = vshrl.u32 %v590, 7
    %v592 = vsub.s32 0, %v591
    %v593 = vrot.slane %v588, %v592
    %v599 = vunpack.c.l.b16 %v584
    %v600 = vunpack.c.l.b16 %v585
    %v601 = vunpack.c.l.b16 %v586
    %v602 = vunpack.c.l.b16 %v587
    %v603 = vpack.c.b16 %v600, %v599
    %v604 = vpack.c.b16 %v602, %v601
    %v608 = vsel %vm79, %v583, 0
    %610 = vmatprep.subr.bf16.mxu0 0
    %611 = vmatpush1.bf16.msra.mxu0 0
    %612 = vmatprep.subr.bf16.mxu0 0
    %613 = vmatpush1.bf16.msra.mxu0 0
    %614 = vmatprep.subr.bf16.mxu0 0
    %615 = vmatpush1.bf16.msra.mxu0 0
    %616 = vmatprep.subr.bf16.mxu0 0
    %617 = vmatpush1.bf16.msra.mxu0 0
    %618 = vmatprep.subr.bf16.mxu0 0
    %619 = vmatpush1.bf16.msra.mxu0 0
    %620 = vmatprep.subr.bf16.mxu0 0
    %621 = vmatpush1.bf16.msra.mxu0 0
    %622 = vmatprep.subr.bf16.mxu0 0
    %623 = vmatpush1.bf16.msra.mxu0 %v604
    %624 = vmatprep.subr.bf16.mxu0 0
    %625 = vmatpush1.bf16.msra.mxu0 %v603
    %626 = vmatprep.subr.bf16.mxu0 0
    %627 = vmatpush2.bf16.msra.mxu0 0
    %628 = vmatprep.subr.bf16.mxu0 0
    %629 = vmatpush2.bf16.msra.mxu0 0
    %630 = vmatprep.subr.bf16.mxu0 0
    %631 = vmatpush2.bf16.msra.mxu0 0
    %632 = vmatprep.subr.bf16.mxu0 0
    %633 = vmatpush2.bf16.msra.mxu0 0
    %634 = vmatprep.subr.bf16.mxu0 0
    %635 = vmatpush2.bf16.msra.mxu0 0
    %636 = vmatprep.subr.bf16.mxu0 0
    %637 = vmatpush2.bf16.msra.mxu0 0
    %638 = vmatprep.subr.bf16.mxu0 0
    %639 = vmatpush2.bf16.msra.mxu0 0
    %640 = vmatprep.subr.bf16.mxu0 0
    %641 = vmatpush2.bf16.msra.mxu0 0
    %642 = vmatprep.mubr.bf16.mxu0 0
    %643 = vmatmul.mubr.bf16.gmra.mxu0 %v608
    %v644 = vpop.f32.mrf.mxu0
    %v645 = vadd.f32 %v593, %v644
    %v646 = vpop.f32.mrf.mxu0
    %v647 = vpop.f32.mrf.mxu0
    %v648 = vadd.f32 %v593, %v647
    %v649 = vpop.f32.mrf.mxu0
    %650 = vdwg.mxu0
    %651 = vst.msk [vmem:[#allocation8] sm:$0xff] %vm79, %v645
    %652 = vst.msk [vmem:[#allocation8 + $0x8] sm:$0xff] %vm79, %v648
    // Predicated region
    $region30: #{tpu_custom_call.1} parent=1 // pred_check
      _
    $region31: #{tpu_custom_call.1} parent=1 // pred_check_branch
      %654 = sbr.rel (0) target = $region33
    $region32: #{tpu_custom_call.1} parent=1 // pred_region
      %s656 = ssub.s32 256, 256
      %657 = vsyncadd [#allocation4], %s656
      %s658 = sshll.u32 [#allocation8], 4
      %s659 = int_to_ptr.vmem [resolvable:$true] %s658
      %664 = dma.vmem_to_hbm [thread:$0]  %s659, 256, %s4, [#allocation4], 128, 128, 8
    $region33: #{tpu_custom_call.1} parent=1 // pred_fallthru
      _
    // Predicated region
    $region34: #{tpu_custom_call.1} parent=1 // pred_check
      _
    $region35: #{tpu_custom_call.1} parent=1 // pred_check_branch
      %666 = sbr.rel (0) target = $region37
    $region36: #{tpu_custom_call.1} parent=1 // pred_region
      %667 = dma.done [#allocation4], 256
    $region37: #{tpu_custom_call.1} parent=1 // pred_fallthru
      _
    %668 = vsyncpa [#allocation3], 1
    %669 = vsyncpa [#allocation6], 1
    %670 = vsyncpa [#allocation4], 1

</llo_original>
